<compile_context>
chip_gen: v6e
topology: v6e:2x2x1
jax: 0.10.0
libtpu: 0.0.40
codegen_flags: <defaults>
</compile_context>

<pallas_src>
import functools

import jax
import jax.numpy as jnp
from jax.experimental import pallas as pl
from jax.experimental.pallas import tpu as pltpu


def _round_up(x, m):
    return (x + m - 1) // m * m


def _ce_label_smooth_kernel(num_classes, tile_b, n_src, epsilon,
                            logits_ref, labels_ref, loss_ref):
    """One batch tile of label-smoothed cross entropy (folded form)."""
    x = logits_ref[...].astype(jnp.float32)                          # (TB, C)
    m = jnp.max(x, axis=1, keepdims=True)                            # (TB, 1)
    shifted = x - m                                                  # (TB, C)
    lse = jnp.log(jnp.sum(jnp.exp(shifted), axis=1, keepdims=True))  # (TB, 1)

    labels = labels_ref[...]                                         # (TB, 1) i32
    cls_ids = jax.lax.broadcasted_iota(jnp.int32, x.shape, 1)
    # shifted[row, label[row]] via a single masked lane-reduce (no f32 one-hot).
    picked = jnp.sum(jnp.where(cls_ids == labels, shifted, 0.0),
                     axis=1, keepdims=True)                          # (TB, 1)
    row_sum = jnp.sum(shifted, axis=1, keepdims=True)                # (TB, 1)

    if n_src > 0:
        # Per-row epsilon: `epsilon` for global rows < n_src, 0 afterwards.
        row0 = pl.program_id(0) * tile_b
        rows = row0 + jax.lax.broadcasted_iota(jnp.int32, (tile_b, 1), 0)
        eps = jnp.where(rows < n_src, jnp.float32(epsilon), jnp.float32(0.0))
    else:
        eps = jnp.float32(epsilon)                                   # scalar

    # Folded label-smoothed CE:
    #   loss = lse - (1-eps)*shifted[label] - (eps/C)*sum_c shifted_c
    # TODO(synk): lane-dense (1, TILE_B) loss store skipped (needs an in-kernel
    # relayout); output bytes are ~1/C of input bytes so the win is negligible.
    loss_ref[...] = lse - (1.0 - eps) * picked - (eps / num_classes) * row_sum


def cross_entropy_label_smooth(inputs, targets, n_src=0, *, num_classes,
                               epsilon=0.1, reduction=True, tile_b=None):
    """JAX/Pallas equivalent of CrossEntropyLabelSmooth.forward.

    inputs : (B, C) float logits (any float dtype; upcast to f32 in-kernel)
    targets: (B,)   int class labels
    """
    batch, classes = inputs.shape
    assert classes == num_classes
    # TODO(synk): no class-dim tiling (online-LSE) — assumes one (TILE_B, C)
    # row-block fits VMEM, which holds for the class counts this loss is used with.

    itemsize = jnp.dtype(inputs.dtype).itemsize
    # Sublane multiple for this dtype: f32 -> 8, bf16 -> 16, int8/fp8 -> 32.
    sub = 8 * max(1, 4 // itemsize)

    # Pick the batch tile so (double-buffered input + f32 working set) stays
    # well inside v7x's 64 MiB VMEM while amortizing per-step overhead.
    per_row_bytes = classes * (3 * 4 + 2 * itemsize)
    if tile_b is None:
        tile_b = (32 * 1024 * 1024) // per_row_bytes
        tile_b = max(sub, min(512, tile_b))
    tile_b = max(sub, (int(tile_b) // sub) * sub)
    # Don't over-allocate VMEM for tiny batches.
    tile_b = min(tile_b, _round_up(batch, sub))

    grid = (pl.cdiv(batch, tile_b),)

    labels_col = targets.astype(jnp.int32).reshape(batch, 1)

    cost = pl.CostEstimate(
        flops=int(6 * batch * classes),
        transcendentals=int(batch * classes + batch),
        bytes_accessed=int(batch * classes * itemsize + 8 * batch),
    )

    kernel = functools.partial(_ce_label_smooth_kernel, num_classes, tile_b,
                               int(n_src), float(epsilon))

    loss_col = pl.pallas_call(
        kernel,
        grid=grid,
        in_specs=[
            pl.BlockSpec((tile_b, classes), lambda i: (i, 0)),
            pl.BlockSpec((tile_b, 1), lambda i: (i, 0)),
        ],
        out_specs=pl.BlockSpec((tile_b, 1), lambda i: (i, 0)),
        out_shape=jax.ShapeDtypeStruct((batch, 1), jnp.float32),
        compiler_params=pltpu.CompilerParams(
            dimension_semantics=("parallel",),
            vmem_limit_bytes=64 * 1024 * 1024,
        ),
        cost_estimate=cost,
    )(inputs, labels_col)

    loss = loss_col[:, 0]
    if reduction:
        return jnp.mean(loss)           # batch mean done in the wrapper
    return loss


def _reference(inputs, targets, n_src, num_classes, epsilon, reduction):
    # Pure-JAX reference (mirrors the PyTorch module).
    batch = inputs.shape[0]
    log_probs = jax.nn.log_softmax(inputs.astype(jnp.float32), axis=1)
    one_hot = jax.nn.one_hot(targets, num_classes, dtype=jnp.float32)
    if n_src > 0:
        eps = jnp.where(jnp.arange(batch) < n_src, epsilon, 0.0)[:, None]
    else:
        eps = epsilon
    t = (1.0 - eps) * one_hot + eps / num_classes
    loss = jnp.sum(-t * log_probs, axis=1)
    return jnp.mean(loss) if reduction else loss


if __name__ == "__main__":
    key = jax.random.PRNGKey(0)
    k1, k2, k3, k4 = jax.random.split(key, 4)

    # Case 1: small f32, reduction=True with "source" rows.
    batch, num_classes = 8, 16
    logits = jax.random.normal(k1, (batch, num_classes), dtype=jnp.float32)
    labels = jax.random.randint(k2, (batch,), 0, num_classes)

    out = cross_entropy_label_smooth(logits, labels, n_src=3,
                                     num_classes=num_classes, epsilon=0.1,
                                     reduction=True)
    out = jax.block_until_ready(out)
    ref = _reference(logits, labels, 3, num_classes, 0.1, True)
    assert jnp.allclose(out, ref, atol=1e-5), (out, ref)

    # Case 2: per-sample losses (reduction=False), n_src=0.
    out_vec = cross_entropy_label_smooth(logits, labels, n_src=0,
                                         num_classes=num_classes, epsilon=0.1,
                                         reduction=False)
    out_vec = jax.block_until_ready(out_vec)
    ref_vec = _reference(logits, labels, 0, num_classes, 0.1, False)
    assert jnp.allclose(out_vec, ref_vec, atol=1e-5)

    # Case 3: bf16 logits, multi-tile grid with a partial (ragged) last block.
    batch2, classes2 = 40, 128
    logits2 = jax.random.normal(k3, (batch2, classes2),
                                dtype=jnp.float32).astype(jnp.bfloat16)
    labels2 = jax.random.randint(k4, (batch2,), 0, classes2)
    out2 = cross_entropy_label_smooth(logits2, labels2, n_src=10,
                                      num_classes=classes2, epsilon=0.1,
                                      reduction=True, tile_b=16)
    out2 = jax.block_until_ready(out2)
    ref2 = _reference(logits2.astype(jnp.float32), labels2, 10, classes2,
                      0.1, True)
    assert jnp.allclose(out2, ref2, atol=1e-4, rtol=1e-4), (out2, ref2)

    print("KERNEL_OK")
</pallas_src>

<mosaic_0001>
module attributes {stable_mosaic.version = 11 : i64} {
  func.func @_ce_label_smooth_kernel(%arg0: i32, %arg1: memref<8x16xf32, #tpu.memory_space<vmem>>, %arg2: memref<8x1xi32, #tpu.memory_space<vmem>>, %arg3: memref<8x1xf32, #tpu.memory_space<vmem>>) attributes {dimension_semantics = [#tpu.dimension_semantics<parallel>], iteration_bounds = array<i64: 1>, scalar_prefetch = 0 : i64, scratch_operands = 0 : i64, tpu.core_type = #tpu.core_type<tc>, window_params = [{transform_indices = @transform_0, window_bounds = array<i64: 8, 16>}, {transform_indices = @transform_1, window_bounds = array<i64: 8, 1>}, {transform_indices = @transform_2, window_bounds = array<i64: 8, 1>}]} {
    %c0 = arith.constant 0 : index
    %c0_0 = arith.constant 0 : index
    %0 = vector.load %arg1[%c0, %c0_0] : memref<8x16xf32, #tpu.memory_space<vmem>>, vector<8x16xf32>
    %cst = arith.constant dense<0xFF800000> : vector<8xf32>
    %1 = vector.multi_reduction <maximumf>, %0, %cst [1] : vector<8x16xf32> to vector<8xf32>
    %2 = vector.shape_cast %1 : vector<8xf32> to vector<8x1xf32>
    %3 = vector.broadcast %2 : vector<8x1xf32> to vector<8x16xf32>
    %4 = arith.subf %0, %3 : vector<8x16xf32>
    %5 = math.exp %4 : vector<8x16xf32>
    %cst_1 = arith.constant dense<0.000000e+00> : vector<8xf32>
    %6 = vector.multi_reduction <add>, %5, %cst_1 [1] : vector<8x16xf32> to vector<8xf32>
    %7 = vector.shape_cast %6 : vector<8xf32> to vector<8x1xf32>
    %8 = math.log %7 : vector<8x1xf32>
    %c0_2 = arith.constant 0 : index
    %c0_3 = arith.constant 0 : index
    %9 = vector.load %arg2[%c0_2, %c0_3] : memref<8x1xi32, #tpu.memory_space<vmem>>, vector<8x1xi32>
    %10 = tpu.iota {dimensions = array<i32: 1>} : vector<8x16xi32>
    %11 = vector.broadcast %9 : vector<8x1xi32> to vector<8x16xi32>
    %12 = arith.cmpi eq, %10, %11 : vector<8x16xi32>
    %cst_4 = arith.constant 0.000000e+00 : f32
    %13 = vector.broadcast %cst_4 : f32 to vector<8x16xf32>
    %14 = arith.select %12, %4, %13 : vector<8x16xi1>, vector<8x16xf32>
    %cst_5 = arith.constant dense<0.000000e+00> : vector<8xf32>
    %15 = vector.multi_reduction <add>, %14, %cst_5 [1] : vector<8x16xf32> to vector<8xf32>
    %16 = vector.shape_cast %15 : vector<8xf32> to vector<8x1xf32>
    %cst_6 = arith.constant dense<0.000000e+00> : vector<8xf32>
    %17 = vector.multi_reduction <add>, %4, %cst_6 [1] : vector<8x16xf32> to vector<8xf32>
    %18 = vector.shape_cast %17 : vector<8xf32> to vector<8x1xf32>
    %c8_i32 = arith.constant 8 : i32
    %19 = arith.muli %arg0, %c8_i32 : i32
    %20 = tpu.iota {dimensions = array<i32: 0>} : vector<8x1xi32>
    %21 = vector.broadcast %19 : i32 to vector<8x1xi32>
    %22 = arith.addi %21, %20 : vector<8x1xi32>
    %c3_i32 = arith.constant 3 : i32
    %23 = vector.broadcast %c3_i32 : i32 to vector<8x1xi32>
    %24 = arith.cmpi slt, %22, %23 : vector<8x1xi32>
    %cst_7 = arith.constant 1.000000e-01 : f32
    %cst_8 = arith.constant 0.000000e+00 : f32
    %25 = vector.broadcast %cst_7 : f32 to vector<8x1xf32>
    %26 = vector.broadcast %cst_8 : f32 to vector<8x1xf32>
    %27 = arith.select %24, %25, %26 : vector<8x1xi1>, vector<8x1xf32>
    %cst_9 = arith.constant 1.000000e+00 : f32
    %28 = vector.broadcast %cst_9 : f32 to vector<8x1xf32>
    %29 = arith.subf %28, %27 : vector<8x1xf32>
    %30 = arith.mulf %29, %16 : vector<8x1xf32>
    %31 = arith.subf %8, %30 : vector<8x1xf32>
    %cst_10 = arith.constant 1.600000e+01 : f32
    %32 = vector.broadcast %cst_10 : f32 to vector<8x1xf32>
    %33 = arith.divf %27, %32 : vector<8x1xf32>
    %34 = arith.mulf %33, %18 : vector<8x1xf32>
    %35 = arith.subf %31, %34 : vector<8x1xf32>
    %c0_11 = arith.constant 0 : index
    %c0_12 = arith.constant 0 : index
    %36 = vector.load %arg3[%c0_11, %c0_12] : memref<8x1xf32, #tpu.memory_space<vmem>>, vector<8x1xf32>
    tpu.vector_store %arg3[%c0_11, %c0_12], %35 {strides = array<i32>} : memref<8x1xf32, #tpu.memory_space<vmem>>, vector<8x1xf32>,
    return
  }
  func.func @transform_0(%arg0: i32) -> (i32, i32) {
    %c0_i32 = arith.constant 0 : i32
    %c0_i32_0 = arith.constant 0 : i32
    return %arg0, %c0_i32 : i32, i32
  }
  func.func @transform_1(%arg0: i32) -> (i32, i32) {
    %c0_i32 = arith.constant 0 : i32
    %c0_i32_0 = arith.constant 0 : i32
    return %arg0, %c0_i32 : i32, i32
  }
  func.func @transform_2(%arg0: i32) -> (i32, i32) {
    %c0_i32 = arith.constant 0 : i32
    %c0_i32_0 = arith.constant 0 : i32
    return %arg0, %c0_i32 : i32, i32
  }
}

</mosaic_0001>

<llo_original>
// kernel: tpu_custom_call.1
$region0: #{tpu_custom_call.1}
  #allocation0 [shape = 'u32[]', space=smem, size = 0x4, offset = 0x4, fixed_abs, tag = 'smem constant byte address 0x4 - core index']
  #allocation1 [shape = 'u32[144,128]{1,0:T(1,128)}', space=vmem, size = 0x12000, scoped, tag = 'internal scratch']
  %s0 = inlined_call_operand.vmem [shape: f32[8,16], index: 0, kind: input, shape index: {}]
  %s1 = inlined_call_operand.vmem [shape: s32[8,1], index: 1, kind: input, shape index: {}]
  %s2 = inlined_call_operand.vmem [shape: f32[8,1], index: 2, kind: output, shape index: {}]
  %s3 = sld [smem:[#allocation0]]
  $region18: #{tpu_custom_call.1} parent=0
    _
  %s5 = ssub.s32 1, %s3
  %s6 = scalar_select 0, %s5, %s3
  // Predicated region
  $region2: #{tpu_custom_call.1} parent=0 // pred_check
    _
  $region3: #{tpu_custom_call.1} parent=0 // pred_check_branch
    %8 = sbr.rel (0) target = $region5
  $region4: #{tpu_custom_call.1} parent=0 // pred_region
    _
  $region5: #{tpu_custom_call.1} parent=0 // pred_fallthru
    _
  // Predicated region
  $region6: #{tpu_custom_call.1} parent=0 // pred_check
    _
  $region7: #{tpu_custom_call.1} parent=0 // pred_check_branch
    %10 = sbr.rel (0) target = $region9
  $region8: #{tpu_custom_call.1} parent=0 // pred_region
    _
  $region9: #{tpu_custom_call.1} parent=0 // pred_fallthru
    _
  %v11 = vld [vmem:[%s0] sm:$0xff]
  %vm12 = vcmask 130048
  %v13 = vsel %vm12, %v11, -inf
  %14 = vmax.xlane.f32.xlu0 %v13
  %v15 = vpop.xlane.xlu0 %14
  %v16 = vsub.f32 %v11, %v15
  %v17 = vmul.f32 %v16, 1.442695
  %v18 = vpow.pop %v17
  %v19 = vsel %vm12, %v18, 0.0
  %20 = vadd.xlane.f32.xlu0 %v19
  %v21 = vpop.xlane.xlu0 %20
  %v22 = vlog2.pop %v21
  %v23 = vmul.f32 %v22, 0.6931472
  %v24 = vld [vmem:[%s1] sm:$0xff]
  %v25 = vlaneseq
  %v26 = vand.u32 %v25, 127
  %27 = vset.pattern.permute.xlu0 0
  %28 = vperm.xlu0 %27, %v24
  %v29 = vpop.permute.xlu0 %28
  %vm30 = vcmp.eq.s32.totalorder %v26, %v29
  %v31 = vsel %vm30, %v16, 0.0
  %v32 = vsel %vm12, %v31, 0.0
  %33 = vadd.xlane.f32.xlu0 %v32
  %v34 = vpop.xlane.xlu0 %33
  %v35 = vsel %vm12, %v16, 0.0
  %36 = vadd.xlane.f32.xlu0 %v35
  %v37 = vpop.xlane.xlu0 %36
  %s38 = smul.u32 0, 8
  %v39 = vlaneseq
  %v40 = vshrl.u32 %v39, 7
  %v41 = vstv %s38
  %v42 = vadd.s32 %v41, %v40
  %vm43 = vcmp.lt.s32.totalorder %v42, 3
  %v44 = vsel %vm43, 0.1, 0.0
  %v45 = vsub.f32 1.0, %v44
  %v46 = vmul.f32 %v45, %v34
  %v47 = vsub.f32 %v23, %v46
  %v48 = vrcp.pop 16.0
  %v49 = vmul.f32 %v44, %v48
  %v50 = vmul.f32 %v49, %v37
  %v51 = vsub.f32 %v47, %v50
  %vm52 = vcmask 7168
  %53 = vst.msk [vmem:[%s2] sm:$0xff] %vm52, %v51
  // Predicated region
  $region10: #{tpu_custom_call.1} parent=0 // pred_check
    _
  $region11: #{tpu_custom_call.1} parent=0 // pred_check_branch
    %55 = sbr.rel (0) target = $region13
  $region12: #{tpu_custom_call.1} parent=0 // pred_region
    _
  $region13: #{tpu_custom_call.1} parent=0 // pred_fallthru
    _
  // Predicated region
  $region14: #{tpu_custom_call.1} parent=0 // pred_check
    _
  $region15: #{tpu_custom_call.1} parent=0 // pred_check_branch
    %57 = sbr.rel (0) target = $region17
  $region16: #{tpu_custom_call.1} parent=0 // pred_region
    _
  $region17: #{tpu_custom_call.1} parent=0 // pred_fallthru
    _

</llo_original>
